<compile_context>
chip_gen: v6e
topology: v6e:2x2x1
jax: 0.10.0
libtpu: 0.0.40
codegen_flags: <defaults>
</compile_context>

<pallas_src>
import jax
import jax.numpy as jnp
from jax import lax
from jax.experimental import pallas as pl
from jax.experimental.pallas import tpu as pltpu


def _synet_kernel(x_ref, w_mic_ref, w_macT_ref, b_mic_ref, b_mac_ref,
                  macro_ref, micro_ref, xbar_ref):
    bt, f, length = x_ref.shape
    w_mic = w_mic_ref[...]                       # (NL, F) f32, norm folded in
    b_mic = b_mic_ref[...]                       # (NL, 1)
    inv_len = jnp.float32(1.0 / length)

    def body(b, carry):
        xb = x_ref[b].astype(jnp.float32)        # (F, L): one batch slab, f32 math
        # Micro head: single 2-D MXU dot per batch, lane-dense (NL, L) store.
        y = jnp.dot(w_mic, xb, preferred_element_type=jnp.float32) + b_mic
        micro_ref[b] = y.astype(micro_ref.dtype)
        # Time mean of x for the macro head (linearity): one lane reduce.
        row = (jnp.sum(xb, axis=-1) * inv_len).reshape(1, f)     # (1, F)
        xbar_ref[pl.ds(b, 1), :] = row
        return carry

    lax.fori_loop(0, bt, body, None)

    # Macro head: (Bt, F) @ (F, NL) + bias — one small dense MXU pass.
    macro = jnp.dot(xbar_ref[...], w_macT_ref[...],
                    preferred_element_type=jnp.float32) + b_mac_ref[...]
    macro_ref[...] = macro.astype(macro_ref.dtype)


def _vmem_capacity_bytes():
    # Per-generation VMEM: 128 MiB on v5e/v6e, 64 MiB per TensorCore on v7x.
    try:
        return int(pltpu.get_tpu_info().vmem_capacity_bytes)
    except Exception:
        return 64 << 20   # conservative (v7x-safe) fallback


def _plan_blocks(batch, freq_dim, length, num_labels, x_bytes, micro_bytes):
    """Pick the block-batch size Bt and a matching vmem_limit_bytes."""
    cap = _vmem_capacity_bytes()
    budget = int(cap * 0.45)          # headroom for compiler temporaries/spills

    def step_bytes(bt):
        # Pallas double-buffers every blocked operand (inputs AND outputs).
        dbl = 2 * (bt * freq_dim * length * x_bytes           # x tile
                   + bt * num_labels * length * micro_bytes   # micro out tile
                   + bt * num_labels * 4                      # macro out tile
                   + 2 * num_labels * freq_dim * 4            # both weight blocks
                   + 2 * num_labels * 4)                      # both bias blocks
        return dbl + bt * freq_dim * 4                        # xbar scratch (single)

    # Macro output block is 2-D (Bt, NL): Bt is on sublanes, so it must be a
    # multiple of 8 or the full batch.
    aligned = [d for d in range(1, batch + 1)
               if batch % d == 0 and (d % 8 == 0 or d == batch)]
    fitting = [d for d in aligned if step_bytes(d) <= budget]
    pool = fitting if fitting else [min(aligned)]
    # Prefer >= 2 (ideally an even number of) grid steps so v7x's 2 TCs both
    # get work; otherwise take the biggest tile (fewest grid steps).
    even_steps = [d for d in pool if (batch // d) % 2 == 0]
    multi_steps = [d for d in pool if batch // d >= 2]
    if even_steps:
        bt = max(even_steps)
    elif multi_steps:
        bt = max(multi_steps)
    else:
        bt = max(pool)
    vmem_limit = min(int(cap * 0.9), max(2 * step_bytes(bt), 16 << 20))
    return bt, vmem_limit


def synet_forward(x, avg, std, w_macro, b_macro, w_micro, b_micro, *,
                  transport_dtype=jnp.bfloat16, out_dtype=jnp.float32):
    """x: (B, F, L). Returns (macro_out (B, NL) f32, micro_out (B, NL, L))."""
    B, F, L = x.shape
    NL = w_macro.shape[0]

    # Fold (x - avg)/std into the heads: W' = W / std, b' = b - W' @ avg.
    # NOTE: no std==0 guard (matches the PyTorch module).
    inv_std = 1.0 / std.astype(jnp.float32)                    # (F,)
    avg_f = avg.astype(jnp.float32)
    w_mic_f = w_micro.astype(jnp.float32) * inv_std[None, :]   # (NL, F)
    w_mac_f = w_macro.astype(jnp.float32) * inv_std[None, :]   # (NL, F)
    b_mic2d = (b_micro.astype(jnp.float32) - w_mic_f @ avg_f).reshape(NL, 1)
    b_mac2d = (b_macro.astype(jnp.float32) - w_mac_f @ avg_f).reshape(1, NL)
    w_macT = w_mac_f.T                                          # (F, NL)

    x_t = x.astype(transport_dtype)      # bf16 transport halves HBM read bytes

    Bt, vmem_limit = _plan_blocks(
        B, F, L, NL,
        x_bytes=jnp.dtype(transport_dtype).itemsize,
        micro_bytes=jnp.dtype(out_dtype).itemsize)

    grid_spec = pltpu.PrefetchScalarGridSpec(
        num_scalar_prefetch=0,
        grid=(B // Bt,),
        in_specs=[
            pl.BlockSpec((Bt, F, L), lambda i: (i, 0, 0)),   # x tile (Bt batches)
            pl.BlockSpec((NL, F), lambda i: (0, 0)),         # folded micro weights
            pl.BlockSpec((F, NL), lambda i: (0, 0)),         # folded macro weights^T
            pl.BlockSpec((NL, 1), lambda i: (0, 0)),         # folded micro bias
            pl.BlockSpec((1, NL), lambda i: (0, 0)),         # folded macro bias
        ],
        out_specs=[
            pl.BlockSpec((Bt, NL), lambda i: (i, 0)),        # macro
            pl.BlockSpec((Bt, NL, L), lambda i: (i, 0, 0)),  # micro (L lane-dense)
        ],
        scratch_shapes=[pltpu.VMEM((Bt, F), jnp.float32)],   # per-batch time means
    )

    cost = pl.CostEstimate(
        flops=2 * B * NL * F * L + 2 * B * F * NL + B * F * L,
        transcendentals=0,
        bytes_accessed=(B * F * L * jnp.dtype(transport_dtype).itemsize
                        + B * NL * L * jnp.dtype(out_dtype).itemsize
                        + B * NL * 4
                        + 2 * NL * F * 4 + 2 * NL * 4),
    )

    macro_out, micro_out = pl.pallas_call(
        _synet_kernel,
        grid_spec=grid_spec,
        out_shape=(
            jax.ShapeDtypeStruct((B, NL), jnp.float32),
            jax.ShapeDtypeStruct((B, NL, L), out_dtype),
        ),
        compiler_params=pltpu.CompilerParams(
            dimension_semantics=("parallel",),
            vmem_limit_bytes=vmem_limit),
        cost_estimate=cost,
    )(x_t, w_mic_f, w_macT, b_mic2d, b_mac2d)
    return macro_out, micro_out


def _reference(x, avg, std, w_macro, b_macro, w_micro, b_micro):
    xn = (x - avg[None, :, None]) / std[None, :, None]
    micro = jnp.einsum("nf,bfl->bnl", w_micro, xn) + b_micro[None, :, None]
    macro = jnp.mean(jnp.einsum("nf,bfl->bnl", w_macro, xn), axis=-1) + b_macro[None, :]
    return macro, micro


if __name__ == "__main__":
    B, F, L, NL = 2, 16, 128, 8   # batch, freq_dim, length, num_labels

    key = jax.random.PRNGKey(0)
    kx, kwm, kbm, kwu, kbu, kstd = jax.random.split(key, 6)

    x = jax.random.normal(kx, (B, F, L), dtype=jnp.float32)
    # Net.__init__ defaults are avg=zeros, std=ones; use non-trivial values to
    # exercise the (folded) normalization.
    avg = jnp.linspace(-0.5, 0.5, F, dtype=jnp.float32)
    std = 1.0 + 0.1 * jnp.abs(jax.random.normal(kstd, (F,), dtype=jnp.float32))

    w_macro = 0.1 * jax.random.normal(kwm, (NL, F), dtype=jnp.float32)
    b_macro = 0.01 * jax.random.normal(kbm, (NL,), dtype=jnp.float32)
    w_micro = 0.1 * jax.random.normal(kwu, (NL, F), dtype=jnp.float32)
    b_micro = 0.01 * jax.random.normal(kbu, (NL,), dtype=jnp.float32)

    ref_macro, ref_micro = _reference(x, avg, std, w_macro, b_macro,
                                      w_micro, b_micro)

    # Exact-transport path (f32): tight check against the f32 reference.
    macro32, micro32 = synet_forward(x, avg, std, w_macro, b_macro,
                                     w_micro, b_micro,
                                     transport_dtype=jnp.float32)
    jax.block_until_ready((macro32, micro32))
    assert macro32.shape == (B, NL) and micro32.shape == (B, NL, L)
    assert jnp.allclose(macro32, ref_macro, atol=1e-4, rtol=1e-4)
    assert jnp.allclose(micro32, ref_micro, atol=1e-4, rtol=1e-4)

    # Default bandwidth-optimized path (bf16 transport of x): looser tolerance.
    macro_bf, micro_bf = synet_forward(x, avg, std, w_macro, b_macro,
                                       w_micro, b_micro)
    jax.block_until_ready((macro_bf, micro_bf))
    assert macro_bf.shape == (B, NL) and micro_bf.shape == (B, NL, L)
    assert jnp.allclose(macro_bf, ref_macro, atol=3e-2, rtol=3e-2)
    assert jnp.allclose(micro_bf, ref_micro, atol=3e-2, rtol=3e-2)

    print("KERNEL_OK")
</pallas_src>

<mosaic_0001>
module attributes {stable_mosaic.version = 11 : i64} {
  func.func @_synet_kernel(%arg0: i32, %arg1: memref<2x16x128xf32, #tpu.memory_space<vmem>>, %arg2: memref<8x16xf32, #tpu.memory_space<vmem>>, %arg3: memref<16x8xf32, #tpu.memory_space<vmem>>, %arg4: memref<8x1xf32, #tpu.memory_space<vmem>>, %arg5: memref<1x8xf32, #tpu.memory_space<vmem>>, %arg6: memref<2x8xf32, #tpu.memory_space<vmem>>, %arg7: memref<2x8x128xf32, #tpu.memory_space<vmem>>, %arg8: memref<2x16xf32, #tpu.memory_space<vmem>>) attributes {dimension_semantics = [#tpu.dimension_semantics<parallel>], iteration_bounds = array<i64: 1>, scalar_prefetch = 0 : i64, scratch_operands = 1 : i64, tpu.core_type = #tpu.core_type<tc>, window_params = [{transform_indices = @transform_0, window_bounds = array<i64: 2, 16, 128>}, {pipeline_mode = #tpu.pipeline_mode<synchronous>, transform_indices = @transform_1, window_bounds = array<i64: 8, 16>}, {pipeline_mode = #tpu.pipeline_mode<synchronous>, transform_indices = @transform_2, window_bounds = array<i64: 16, 8>}, {pipeline_mode = #tpu.pipeline_mode<synchronous>, transform_indices = @transform_3, window_bounds = array<i64: 8, 1>}, {pipeline_mode = #tpu.pipeline_mode<synchronous>, transform_indices = @transform_4, window_bounds = array<i64: 1, 8>}, {transform_indices = @transform_5, window_bounds = array<i64: 2, 8>}, {transform_indices = @transform_6, window_bounds = array<i64: 2, 8, 128>}]} {
    %c0 = arith.constant 0 : index
    %c0_0 = arith.constant 0 : index
    %0 = vector.load %arg2[%c0, %c0_0] : memref<8x16xf32, #tpu.memory_space<vmem>>, vector<8x16xf32>
    %c0_1 = arith.constant 0 : index
    %c0_2 = arith.constant 0 : index
    %1 = vector.load %arg4[%c0_1, %c0_2] : memref<8x1xf32, #tpu.memory_space<vmem>>, vector<8x1xf32>
    %cst = arith.constant 7.812500e-03 : f32
    %c0_i32 = arith.constant 0 : i32
    %c2_i32 = arith.constant 2 : i32
    %2 = arith.addi %c0_i32, %c2_i32 : i32
    %c1_i32 = arith.constant 1 : i32
    scf.for %arg9 = %c0_i32 to %2 step %c1_i32  : i32 {
      %10 = arith.index_cast %arg9 : i32 to index
      %c0_13 = arith.constant 0 : index
      %c0_14 = arith.constant 0 : index
      %11 = vector.load %arg1[%10, %c0_13, %c0_14] : memref<2x16x128xf32, #tpu.memory_space<vmem>>, vector<1x16x128xf32>
      %12 = vector.shape_cast %11 : vector<1x16x128xf32> to vector<16x128xf32>
      %cst_15 = arith.constant dense<0.000000e+00> : vector<8x128xf32>
      %13 = tpu.matmul %0, %12, %cst_15 {dimension_numbers = #tpu.dot_dimension_numbers<[1], [0], [0], [1], [0, 0, 1, 1], [], []>} : vector<8x16xf32>, vector<16x128xf32>, vector<8x128xf32> -> vector<8x128xf32>
      %14 = vector.broadcast %1 : vector<8x1xf32> to vector<8x128xf32>
      %15 = arith.addf %13, %14 : vector<8x128xf32>
      %16 = arith.index_cast %arg9 : i32 to index
      %c0_16 = arith.constant 0 : index
      %c0_17 = arith.constant 0 : index
      %17 = vector.load %arg7[%16, %c0_16, %c0_17] : memref<2x8x128xf32, #tpu.memory_space<vmem>>, vector<1x8x128xf32>
      %18 = vector.shape_cast %17 : vector<1x8x128xf32> to vector<8x128xf32>
      %19 = vector.shape_cast %15 : vector<8x128xf32> to vector<1x8x128xf32>
      tpu.vector_store %arg7[%16, %c0_16, %c0_17], %19 {strides = array<i32>} : memref<2x8x128xf32, #tpu.memory_space<vmem>>, vector<1x8x128xf32>,
      %cst_18 = arith.constant dense<0.000000e+00> : vector<16xf32>
      %20 = vector.multi_reduction <add>, %12, %cst_18 [1] : vector<16x128xf32> to vector<16xf32>
      %21 = vector.broadcast %cst : f32 to vector<16xf32>
      %22 = arith.mulf %20, %21 : vector<16xf32>
      %23 = vector.shape_cast %22 : vector<16xf32> to vector<1x16xf32>
      %24 = arith.index_cast %arg9 : i32 to index
      %c0_19 = arith.constant 0 : index
      %25 = vector.load %arg8[%24, %c0_19] : memref<2x16xf32, #tpu.memory_space<vmem>>, vector<1x16xf32>
      tpu.vector_store %arg8[%24, %c0_19], %23 {strides = array<i32>} : memref<2x16xf32, #tpu.memory_space<vmem>>, vector<1x16xf32>,
    }
    %c2_i32_3 = arith.constant 2 : i32
    %c0_4 = arith.constant 0 : index
    %c0_5 = arith.constant 0 : index
    %3 = vector.load %arg8[%c0_4, %c0_5] : memref<2x16xf32, #tpu.memory_space<vmem>>, vector<2x16xf32>
    %c0_6 = arith.constant 0 : index
    %c0_7 = arith.constant 0 : index
    %4 = vector.load %arg3[%c0_6, %c0_7] : memref<16x8xf32, #tpu.memory_space<vmem>>, vector<16x8xf32>
    %cst_8 = arith.constant dense<0.000000e+00> : vector<2x8xf32>
    %5 = tpu.matmul %3, %4, %cst_8 {dimension_numbers = #tpu.dot_dimension_numbers<[1], [0], [0], [1], [0, 0, 1, 1], [], []>} : vector<2x16xf32>, vector<16x8xf32>, vector<2x8xf32> -> vector<2x8xf32>
    %c0_9 = arith.constant 0 : index
    %c0_10 = arith.constant 0 : index
    %6 = vector.load %arg5[%c0_9, %c0_10] : memref<1x8xf32, #tpu.memory_space<vmem>>, vector<1x8xf32>
    %7 = vector.broadcast %6 : vector<1x8xf32> to vector<2x8xf32>
    %8 = arith.addf %5, %7 : vector<2x8xf32>
    %c0_11 = arith.constant 0 : index
    %c0_12 = arith.constant 0 : index
    %9 = vector.load %arg6[%c0_11, %c0_12] : memref<2x8xf32, #tpu.memory_space<vmem>>, vector<2x8xf32>
    tpu.vector_store %arg6[%c0_11, %c0_12], %8 {strides = array<i32>} : memref<2x8xf32, #tpu.memory_space<vmem>>, vector<2x8xf32>,
    return
  }
  func.func @transform_0(%arg0: i32) -> (i32, i32, i32) {
    %c0_i32 = arith.constant 0 : i32
    %c0_i32_0 = arith.constant 0 : i32
    %c0_i32_1 = arith.constant 0 : i32
    return %arg0, %c0_i32, %c0_i32_0 : i32, i32, i32
  }
  func.func @transform_1(%arg0: i32) -> (i32, i32) {
    %c0_i32 = arith.constant 0 : i32
    %c0_i32_0 = arith.constant 0 : i32
    %c0_i32_1 = arith.constant 0 : i32
    return %c0_i32, %c0_i32_0 : i32, i32
  }
  func.func @transform_2(%arg0: i32) -> (i32, i32) {
    %c0_i32 = arith.constant 0 : i32
    %c0_i32_0 = arith.constant 0 : i32
    %c0_i32_1 = arith.constant 0 : i32
    return %c0_i32, %c0_i32_0 : i32, i32
  }
  func.func @transform_3(%arg0: i32) -> (i32, i32) {
    %c0_i32 = arith.constant 0 : i32
    %c0_i32_0 = arith.constant 0 : i32
    %c0_i32_1 = arith.constant 0 : i32
    return %c0_i32, %c0_i32_0 : i32, i32
  }
  func.func @transform_4(%arg0: i32) -> (i32, i32) {
    %c0_i32 = arith.constant 0 : i32
    %c0_i32_0 = arith.constant 0 : i32
    %c0_i32_1 = arith.constant 0 : i32
    return %c0_i32, %c0_i32_0 : i32, i32
  }
  func.func @transform_5(%arg0: i32) -> (i32, i32) {
    %c0_i32 = arith.constant 0 : i32
    %c0_i32_0 = arith.constant 0 : i32
    return %arg0, %c0_i32 : i32, i32
  }
  func.func @transform_6(%arg0: i32) -> (i32, i32, i32) {
    %c0_i32 = arith.constant 0 : i32
    %c0_i32_0 = arith.constant 0 : i32
    %c0_i32_1 = arith.constant 0 : i32
    return %arg0, %c0_i32, %c0_i32_0 : i32, i32, i32
  }
}

</mosaic_0001>

<llo_original>
// kernel: tpu_custom_call.1
$region0: #{tpu_custom_call.1}
  #allocation0 [shape = 'u32[]', space=smem, size = 0x4, offset = 0x4, fixed_abs, tag = 'smem constant byte address 0x4 - core index']
  #allocation1 [shape = 'u32[144,128]{1,0:T(1,128)}', space=vmem, size = 0x12000, scoped, tag = 'internal scratch']
  #allocation2 [shape = 'f32[2,16]{1,0:T(2,128)}', space=vmem, size = 0x400, scoped, tag = 'scratch operand']
  %s0 = inlined_call_operand.vmem [shape: f32[2,16,128], index: 0, kind: input, shape index: {}]
  %s1 = inlined_call_operand.hbm [shape: f32[8,16], index: 1, kind: input, shape index: {}]
  %s2 = inlined_call_operand.vmem [shape: f32[16,8], index: 2, kind: input, shape index: {}]
  %s3 = inlined_call_operand.vmem [shape: f32[8,1], index: 3, kind: input, shape index: {}]
  %s4 = inlined_call_operand.vmem [shape: f32[1,8], index: 4, kind: input, shape index: {}]
  %s5 = inlined_call_operand.hbm [shape: f32[2,8], index: 5, kind: output, shape index: {0}]
  %s6 = inlined_call_operand.hbm [shape: f32[2,8,128], index: 6, kind: output, shape index: {1}]
  %7 = xla_tuple %s5, %s6
  %s8 = sld [smem:[#allocation0]]
  $region49: #{tpu_custom_call.1} parent=0
    _
  %s10 = ssub.s32 1, %s8
  %s11 = scalar_select 0, %s10, %s8
  $region1: #{tpu_custom_call.1} parent=0
    #allocation3 [shape = 'u8[4096]{0}', space=vmem, size = 0x1000, scoped, tag = 'input window, operand 1, single buffered']
    #allocation4 [shape = 's32[1]{0}', space=sflag, size = 0x4, scoped, tag = 'scoped memory for tpu_custom_call.1']
    #allocation5 [shape = 's32[1]{0}', space=sflag, size = 0x4, scoped, tag = 'scoped memory for tpu_custom_call.1']
    #allocation6 [shape = 'u8[1024]{0}', space=vmem, size = 0x400, scoped, tag = 'output window, operand 0, single buffered']
    #allocation7 [shape = 'u8[8192]{0}', space=vmem, size = 0x2000, scoped, tag = 'output window, operand 1, single buffered']
    #allocation8 [shape = 's32[1]{0}', space=sflag, size = 0x4, scoped, tag = 'scoped memory for tpu_custom_call.1']
    %12 = vsyncpa [#allocation4], 0
    %13 = vsyncpa [#allocation5], 0
    %14 = vsyncpa [#allocation8], 0
    // Predicated region
    $region2: #{tpu_custom_call.1} parent=1 // pred_check
      _
    $region3: #{tpu_custom_call.1} parent=1 // pred_check_branch
      %16 = sbr.rel (0) target = $region5
    $region4: #{tpu_custom_call.1} parent=1 // pred_region
      _
    $region5: #{tpu_custom_call.1} parent=1 // pred_fallthru
      _
    // Predicated region
    $region6: #{tpu_custom_call.1} parent=1 // pred_check
      _
    $region7: #{tpu_custom_call.1} parent=1 // pred_check_branch
      %18 = sbr.rel (0) target = $region9
    $region8: #{tpu_custom_call.1} parent=1 // pred_region
      %s20 = ssub.s32 128, 128
      %21 = vsyncadd [#allocation4], %s20
      %s23 = sshll.u32 [#allocation3], 4
      %s24 = int_to_ptr.vmem [resolvable:$true] %s23
      %26 = dma.hbm_to_vmem [thread:$0]  %s1, 128, %s24, [#allocation4]
    $region9: #{tpu_custom_call.1} parent=1 // pred_fallthru
      _
    // Predicated region
    $region10: #{tpu_custom_call.1} parent=1 // pred_check
      _
    $region11: #{tpu_custom_call.1} parent=1 // pred_check_branch
      %28 = sbr.rel (0) target = $region13
    $region12: #{tpu_custom_call.1} parent=1 // pred_region
      _
    $region13: #{tpu_custom_call.1} parent=1 // pred_fallthru
      _
    // Predicated region
    $region14: #{tpu_custom_call.1} parent=1 // pred_check
      _
    $region15: #{tpu_custom_call.1} parent=1 // pred_check_branch
      %30 = sbr.rel (0) target = $region17
    $region16: #{tpu_custom_call.1} parent=1 // pred_region
      _
    $region17: #{tpu_custom_call.1} parent=1 // pred_fallthru
      _
    // Predicated region
    $region18: #{tpu_custom_call.1} parent=1 // pred_check
      _
    $region19: #{tpu_custom_call.1} parent=1 // pred_check_branch
      %32 = sbr.rel (0) target = $region21
    $region20: #{tpu_custom_call.1} parent=1 // pred_region
      _
    $region21: #{tpu_custom_call.1} parent=1 // pred_fallthru
      _
    // Predicated region
    $region22: #{tpu_custom_call.1} parent=1 // pred_check
      _
    $region23: #{tpu_custom_call.1} parent=1 // pred_check_branch
      %34 = sbr.rel (0) target = $region25
    $region24: #{tpu_custom_call.1} parent=1 // pred_region
      %35 = dma.done [#allocation4], 128
    $region25: #{tpu_custom_call.1} parent=1 // pred_fallthru
      _
    %v36 = vld [vmem:[#allocation3] sm:$0xff]
    %v37 = vld [vmem:[%s3] sm:$0xff]
    loop: start=0, step=1, limit=2
    $region26: #{tpu_custom_call.1} parent=1 // loop_pre_header
      _
    $region27: #{tpu_custom_call.1} parent=1 // loop_header
      %s39 = sphi 0, %s43
      %p40 = scmp.ge.s32.totalorder %s39, 2
    $region28: #{tpu_custom_call.1} parent=1 // loop_header_branch
      %42 = sbr.rel (%p40) target = $region32
    $region29: #{tpu_custom_call.1} parent=1 // loop_body
      %s44 = smul.u32 %s39, 16
      %s45 = scalar_lea.vmem %s0, %s44
      %v46 = vld [vmem:[%s45] sm:$0xff]
      %v47 = vld [vmem:[%s45 + $0x8] sm:$0xff]
      %49 = vset.pattern.permute.xlu0 0
      %50 = vperm.xlu0 %49, %v37
      %v51 = vpop.permute.xlu0 %50
      %vm53 = vcmask 130048
      %v55 = vsel %vm53, %v36, 0
      %57 = vmatprep.subr.mxu0 0.0
      %58 = vmatpush1.msra.mxu0 0.0
      %59 = vmatprep.subr.mxu0 0.0
      %60 = vmatpush1.msra.mxu0 0.0
      %61 = vmatprep.subr.mxu0 0.0
      %62 = vmatpush1.msra.mxu0 0.0
      %63 = vmatprep.subr.mxu0 0.0
      %64 = vmatpush1.msra.mxu0 0.0
      %65 = vmatprep.subr.mxu0 0.0
      %66 = vmatpush1.msra.mxu0 0.0
      %67 = vmatprep.subr.mxu0 0.0
      %68 = vmatpush1.msra.mxu0 0.0
      %69 = vmatprep.subr.mxu0 0.0
      %70 = vmatpush1.msra.mxu0 0.0
      %71 = vmatprep.subr.mxu0 0.0
      %72 = vmatpush1.msra.mxu0 0.0
      %73 = vmatprep.subr.mxu0 0.0
      %74 = vmatpush1.msra.mxu0 0.0
      %75 = vmatprep.subr.mxu0 0.0
      %76 = vmatpush1.msra.mxu0 0.0
      %77 = vmatprep.subr.mxu0 0.0
      %78 = vmatpush1.msra.mxu0 0.0
      %79 = vmatprep.subr.mxu0 0.0
      %80 = vmatpush1.msra.mxu0 0.0
      %81 = vmatprep.subr.mxu0 0.0
      %82 = vmatpush1.msra.mxu0 0.0
      %83 = vmatprep.subr.mxu0 0.0
      %84 = vmatpush1.msra.mxu0 0.0
      %85 = vmatprep.subr.mxu0 0.0
      %86 = vmatpush1.msra.mxu0 %v47
      %87 = vmatprep.subr.mxu0 0.0
      %88 = vmatpush1.msra.mxu0 %v46
      %89 = vmatprep.subr.mxu0 0.0
      %90 = vmatpush2.msra.mxu0 0.0
      %91 = vmatprep.subr.mxu0 0.0
      %92 = vmatpush2.msra.mxu0 0.0
      %93 = vmatprep.subr.mxu0 0.0
      %94 = vmatpush2.msra.mxu0 0.0
      %95 = vmatprep.subr.mxu0 0.0
      %96 = vmatpush2.msra.mxu0 0.0
      %97 = vmatprep.subr.mxu0 0.0
      %98 = vmatpush2.msra.mxu0 0.0
      %99 = vmatprep.subr.mxu0 0.0
      %100 = vmatpush2.msra.mxu0 0.0
      %101 = vmatprep.subr.mxu0 0.0
      %102 = vmatpush2.msra.mxu0 0.0
      %103 = vmatprep.subr.mxu0 0.0
      %104 = vmatpush2.msra.mxu0 0.0
      %105 = vmatprep.subr.mxu0 0.0
      %106 = vmatpush2.msra.mxu0 0.0
      %107 = vmatprep.subr.mxu0 0.0
      %108 = vmatpush2.msra.mxu0 0.0
      %109 = vmatprep.subr.mxu0 0.0
      %110 = vmatpush2.msra.mxu0 0.0
      %111 = vmatprep.subr.mxu0 0.0
      %112 = vmatpush2.msra.mxu0 0.0
      %113 = vmatprep.subr.mxu0 0.0
      %114 = vmatpush2.msra.mxu0 0.0
      %115 = vmatprep.subr.mxu0 0.0
      %116 = vmatpush2.msra.mxu0 0.0
      %117 = vmatprep.subr.mxu0 0.0
      %118 = vmatpush2.msra.mxu0 0.0
      %119 = vmatprep.subr.mxu0 0.0
      %120 = vmatpush2.msra.mxu0 0.0
      %121 = vmatprep.mubr.f32.mxu0 0.0
      %122 = vmatmul.mubr.f32.gmra.mxu0 %v55
      %v123 = vpop.f32.mrf.mxu0
      %v124 = vadd.f32 %v51, %v123
      %v125 = vpop.f32.mrf.mxu0
      %126 = vdwg.mxu0
      %s127 = smul.u32 %s39, 8
      %s128 = scalar_lea.vmem [#allocation7], %s127
      %129 = vst [vmem:[%s128] sm:$0xff] %v124
      %130 = vadd.xlane.f32.xlu0 %v46
      %v131 = vpop.xlane.xlu0 %130
      %132 = vadd.xlane.f32.xlu0 %v47
      %v133 = vpop.xlane.xlu0 %132
      %v134 = vmul.f32 %v131, 0.0078125
      %v135 = vmul.f32 %v133, 0.0078125
      %v138 = vlaneseq
      %v139 = vand.u32 %v138, 127
      %v140 = vlaneseq
      %v141 = vshrl.u32 %v140, 7
      %v142 = vsub.s32 %v139, %v141
      %v143 = vrot.slane %v134, %v142
      %v144 = vadd.s32 %v139, 4294967288
      %v145 = vlaneseq
      %v146 = vshrl.u32 %v145, 7
      %v147 = vsub.s32 %v144, %v146
      %v148 = vrot.slane %v135, %v147
      %vm149 = vcmask 130112
      %v150 = vsel %vm149, %v148, %v143
      %s152 = scalar_lea.vmem [#allocation2], %s39
      %vm153 = vcmask 122880
      %154 = vst.msk [vmem:[%s152] sm:$0x1] %vm153, %v150
    $region30: #{tpu_custom_call.1} parent=1 // loop_footer
      %s43 = sadd.s32 1, %s39
    $region31: #{tpu_custom_call.1} parent=1 // loop_footer_branch
      %38 = sbr.rel target = $region27
    $region32: #{tpu_custom_call.1} parent=1 // loop_exit
      _
    %v155 = vld [vmem:[#allocation2] sm:$0x3]
    %v156 = vld [vmem:[%s2] sm:$0xff]
    %v157 = vld [vmem:[%s2 + $0x8] sm:$0xff]
    %v158 = vld [vmem:[%s4] sm:$0x1]
    %v160 = vlaneseq
    %v161 = vshrl.u32 %v160, 7
    %v162 = vsub.s32 0, %v161
    %v163 = vrot.slane %v158, %v162
    %vm165 = vcmask 130048
    %v167 = vsel %vm165, %v155, 0
    %169 = vmatprep.subr.mxu0 0.0
    %170 = vmatpush1.msra.mxu0 0.0
    %171 = vmatprep.subr.mxu0 0.0
    %172 = vmatpush1.msra.mxu0 0.0
    %173 = vmatprep.subr.mxu0 0.0
    %174 = vmatpush1.msra.mxu0 0.0
    %175 = vmatprep.subr.mxu0 0.0
    %176 = vmatpush1.msra.mxu0 0.0
    %177 = vmatprep.subr.mxu0 0.0
    %178 = vmatpush1.msra.mxu0 0.0
    %179 = vmatprep.subr.mxu0 0.0
    %180 = vmatpush1.msra.mxu0 0.0
    %181 = vmatprep.subr.mxu0 0.0
    %182 = vmatpush1.msra.mxu0 0.0
    %183 = vmatprep.subr.mxu0 0.0
    %184 = vmatpush1.msra.mxu0 0.0
    %185 = vmatprep.subr.mxu0 0.0
    %186 = vmatpush1.msra.mxu0 0.0
    %187 = vmatprep.subr.mxu0 0.0
    %188 = vmatpush1.msra.mxu0 0.0
    %189 = vmatprep.subr.mxu0 0.0
    %190 = vmatpush1.msra.mxu0 0.0
    %191 = vmatprep.subr.mxu0 0.0
    %192 = vmatpush1.msra.mxu0 0.0
    %193 = vmatprep.subr.mxu0 0.0
    %194 = vmatpush1.msra.mxu0 0.0
    %195 = vmatprep.subr.mxu0 0.0
    %196 = vmatpush1.msra.mxu0 0.0
    %197 = vmatprep.subr.mxu0 0.0
    %198 = vmatpush1.msra.mxu0 %v157
    %199 = vmatprep.subr.mxu0 0.0
    %200 = vmatpush1.msra.mxu0 %v156
    %201 = vmatprep.subr.mxu0 0.0
    %202 = vmatpush2.msra.mxu0 0.0
    %203 = vmatprep.subr.mxu0 0.0
    %204 = vmatpush2.msra.mxu0 0.0
    %205 = vmatprep.subr.mxu0 0.0
    %206 = vmatpush2.msra.mxu0 0.0
    %207 = vmatprep.subr.mxu0 0.0
    %208 = vmatpush2.msra.mxu0 0.0
    %209 = vmatprep.subr.mxu0 0.0
    %210 = vmatpush2.msra.mxu0 0.0
    %211 = vmatprep.subr.mxu0 0.0
    %212 = vmatpush2.msra.mxu0 0.0
    %213 = vmatprep.subr.mxu0 0.0
    %214 = vmatpush2.msra.mxu0 0.0
    %215 = vmatprep.subr.mxu0 0.0
    %216 = vmatpush2.msra.mxu0 0.0
    %217 = vmatprep.subr.mxu0 0.0
    %218 = vmatpush2.msra.mxu0 0.0
    %219 = vmatprep.subr.mxu0 0.0
    %220 = vmatpush2.msra.mxu0 0.0
    %221 = vmatprep.subr.mxu0 0.0
    %222 = vmatpush2.msra.mxu0 0.0
    %223 = vmatprep.subr.mxu0 0.0
    %224 = vmatpush2.msra.mxu0 0.0
    %225 = vmatprep.subr.mxu0 0.0
    %226 = vmatpush2.msra.mxu0 0.0
    %227 = vmatprep.subr.mxu0 0.0
    %228 = vmatpush2.msra.mxu0 0.0
    %229 = vmatprep.subr.mxu0 0.0
    %230 = vmatpush2.msra.mxu0 0.0
    %231 = vmatprep.subr.mxu0 0.0
    %232 = vmatpush2.msra.mxu0 0.0
    %233 = vmatprep.mubr.f32.mxu0 0.0
    %234 = vmatmul.mubr.f32.gmra.mxu0 %v167
    %v235 = vpop.f32.mrf.mxu0
    %v236 = vadd.f32 %v163, %v235
    %v237 = vpop.f32.mrf.mxu0
    %238 = vdwg.mxu0
    %vm239 = vcmask 58368
    %240 = vst.msk [vmem:[#allocation6] sm:$0x3] %vm239, %v236
    // Predicated region
    $region33: #{tpu_custom_call.1} parent=1 // pred_check
      _
    $region34: #{tpu_custom_call.1} parent=1 // pred_check_branch
      %242 = sbr.rel (0) target = $region36
    $region35: #{tpu_custom_call.1} parent=1 // pred_region
      %s244 = ssub.s32 32, 32
      %245 = vsyncadd [#allocation5], %s244
      %s247 = sshll.u32 [#allocation6], 4
      %s248 = int_to_ptr.vmem [resolvable:$true] %s247
      %250 = dma.vmem_to_hbm [thread:$0]  %s248, 32, %s5, [#allocation5]
    $region36: #{tpu_custom_call.1} parent=1 // pred_fallthru
      _
    // Predicated region
    $region37: #{tpu_custom_call.1} parent=1 // pred_check
      _
    $region38: #{tpu_custom_call.1} parent=1 // pred_check_branch
      %252 = sbr.rel (0) target = $region40
    $region39: #{tpu_custom_call.1} parent=1 // pred_region
      %s254 = ssub.s32 256, 256
      %255 = vsyncadd [#allocation8], %s254
      %s256 = sshll.u32 [#allocation7], 4
      %s257 = int_to_ptr.vmem [resolvable:$true] %s256
      %262 = dma.vmem_to_hbm [thread:$0]  %s257, 256, %s6, [#allocation8], 128, 128, 8
    $region40: #{tpu_custom_call.1} parent=1 // pred_fallthru
      _
    // Predicated region
    $region41: #{tpu_custom_call.1} parent=1 // pred_check
      _
    $region42: #{tpu_custom_call.1} parent=1 // pred_check_branch
      %264 = sbr.rel (0) target = $region44
    $region43: #{tpu_custom_call.1} parent=1 // pred_region
      %265 = dma.done [#allocation5], 32
    $region44: #{tpu_custom_call.1} parent=1 // pred_fallthru
      _
    // Predicated region
    $region45: #{tpu_custom_call.1} parent=1 // pred_check
      _
    $region46: #{tpu_custom_call.1} parent=1 // pred_check_branch
      %267 = sbr.rel (0) target = $region48
    $region47: #{tpu_custom_call.1} parent=1 // pred_region
      %268 = dma.done [#allocation8], 256
    $region48: #{tpu_custom_call.1} parent=1 // pred_fallthru
      _
    %269 = vsyncpa [#allocation4], 1
    %270 = vsyncpa [#allocation5], 1
    %271 = vsyncpa [#allocation8], 1

</llo_original>
